<compile_context>
chip_gen: v6e
topology: v6e:2x2x1
jax: 0.10.0
libtpu: 0.0.40
codegen_flags: <defaults>
</compile_context>

<pallas_src>
import jax
import jax.numpy as jnp
from jax import lax
from jax.experimental import pallas as pl
from jax.experimental.pallas import tpu as pltpu


_DMA_WINDOW = 8                      # outstanding row fetches in Path B
_RESIDENT_TABLE_BYTES = 16 << 20     # table-residency cutoff (safe for v7x's 64 MiB VMEM)
_RESIDENT_MAX_FEATURES = 4096        # keeps the per-tile one-hot operand small


def _round_up(a, b):
    return (a + b - 1) // b * b


# ----------------------------------------------------------------------------
# Path A: VMEM-resident table, gather via one-hot matmul on the MXU.
# ----------------------------------------------------------------------------
def _resident_gather_kernel(idx_ref, w_ref, out_ref):
    # idx_ref: (T, 1) int32 tile of indices (VMEM)
    # w_ref:   (F, E) full embedding table, resident in VMEM across all steps
    # out_ref: (T, E) dense output tile
    T = out_ref.shape[0]
    F = w_ref.shape[0]
    idx = idx_ref[...]                                     # (T, 1)
    iota = lax.broadcasted_iota(jnp.int32, (T, F), 1)      # (T, F)
    onehot = (idx == iota).astype(w_ref.dtype)             # (T, F)
    out_ref[...] = jnp.dot(
        onehot, w_ref[...], preferred_element_type=jnp.float32
    ).astype(out_ref.dtype)


# ----------------------------------------------------------------------------
# Path B: table left in HBM, manual windowed row DMAs into the output tile.
# ----------------------------------------------------------------------------
def _dma_gather_kernel(idx_ref, w_hbm, out_ref, sem):
    # idx_ref: scalar-prefetched flat indices (SMEM, length n_pad)
    # w_hbm:   (F, E) table in HBM (memory_space=pl.ANY)
    # out_ref: (T, E) dense output tile (VMEM)
    # sem:     (W,) DMA semaphores -> W outstanding row fetches
    i = pl.program_id(0)
    T = out_ref.shape[0]
    W = min(_DMA_WINDOW, T)

    def _issue(t):
        row = idx_ref[i * T + t]
        pltpu.make_async_copy(w_hbm.at[row], out_ref.at[t], sem.at[t % W]).start()

    # Prime the window (static unroll, W <= 8 copies in flight).
    for t in range(W):
        _issue(t)

    def _body(t, carry):
        # Wait for row t (same byte count as issued copies), then refill the
        # semaphore slot with row t + W.
        pltpu.make_async_copy(w_hbm.at[0], out_ref.at[t], sem.at[t % W]).wait()

        @pl.when(t + W < T)
        def _():
            _issue(t + W)

        return carry

    lax.fori_loop(0, T, _body, 0)


# ----------------------------------------------------------------------------
# Wrapper: equivalent of PyTorch `w[x]`.
# ----------------------------------------------------------------------------
def cpu_embedding_forward(w, x, *, block_indices=256, force_dma_gather=False):
    F, E = w.shape

    # Flatten + clamp indices.  (PyTorch would raise on OOB; clamping keeps the
    # gather / DMA source address in range instead of faulting.)
    idx = jnp.clip(x.reshape(-1).astype(jnp.int32), 0, F - 1)
    n = idx.shape[0]

    itemsize = w.dtype.itemsize

    # Block the index dimension: T indices per grid step, T a multiple of 8,
    # capped so a double-buffered (T, E) output tile stays modest in VMEM.
    T = _round_up(min(block_indices, _round_up(n, 8)), 8)
    max_t_out = max(8, ((4 << 20) // (E * itemsize)) // 8 * 8)
    T = max(8, min(T, max_t_out))
    n_pad = _round_up(n, T)
    idx = jnp.pad(idx, (0, n_pad - n))           # padded slots gather row 0
    grid = (n_pad // T,)

    table_bytes = F * E * itemsize
    use_resident = (
        not force_dma_gather
        and table_bytes <= _RESIDENT_TABLE_BYTES
        and F <= _RESIDENT_MAX_FEATURES
    )

    if use_resident:
        # Scoped-VMEM budget: double-buffered table + double-buffered output
        # tiles + index tiles + one-hot intermediate (+ slack); clamped so it
        # stays safe on v7x (64 MiB physical VMEM per TensorCore).
        needed = (2 * table_bytes + 2 * T * E * itemsize + 2 * T * 4
                  + T * F * itemsize + (4 << 20))
        vmem_limit = int(min(max(needed, 32 << 20), 48 << 20))

        out_flat = pl.pallas_call(
            _resident_gather_kernel,
            grid_spec=pltpu.PrefetchScalarGridSpec(
                num_scalar_prefetch=0,
                grid=grid,
                in_specs=[
                    pl.BlockSpec((T, 1), lambda i: (i, 0)),   # index tile
                    pl.BlockSpec((F, E), lambda i: (0, 0)),   # whole table, resident
                ],
                out_specs=pl.BlockSpec((T, E), lambda i: (i, 0)),
            ),
            out_shape=jax.ShapeDtypeStruct((n_pad, E), w.dtype),
            compiler_params=pltpu.CompilerParams(
                dimension_semantics=("parallel",),
                vmem_limit_bytes=vmem_limit,
            ),
        )(idx.reshape(n_pad, 1), w)
    else:
        W = min(_DMA_WINDOW, T)
        out_flat = pl.pallas_call(
            _dma_gather_kernel,
            grid_spec=pltpu.PrefetchScalarGridSpec(
                num_scalar_prefetch=1,                         # flat indices -> SMEM
                grid=grid,
                in_specs=[pl.BlockSpec(memory_space=pl.ANY)],  # table stays in HBM
                out_specs=pl.BlockSpec((T, E), lambda i, idx_ref: (i, 0)),
                scratch_shapes=[pltpu.SemaphoreType.DMA((W,))],
            ),
            out_shape=jax.ShapeDtypeStruct((n_pad, E), w.dtype),
            compiler_params=pltpu.CompilerParams(
                dimension_semantics=("parallel",),
            ),
        )(idx, w)

    return out_flat[:n].reshape(x.shape + (E,))


def init_embedding_weight(key, feature_nums, emd_layers, dtype=jnp.float32):
    # torch.nn.init.xavier_normal_: std = sqrt(2 / (fan_in + fan_out))
    std = (2.0 / (feature_nums + emd_layers)) ** 0.5
    # NOTE: passing dtype=jnp.bfloat16 halves HBM bytes per gathered row and
    # doubles the table size that can stay VMEM-resident, if precision allows.
    return (std * jax.random.normal(key, (feature_nums, emd_layers))).astype(dtype)


if __name__ == "__main__":
    feature_nums = 64
    emd_layers = 128
    batch, seq = 2, 8

    key = jax.random.PRNGKey(0)
    k_w, k_x = jax.random.split(key)

    w = init_embedding_weight(k_w, feature_nums, emd_layers)
    x = jax.random.randint(k_x, (batch, seq), 0, feature_nums, dtype=jnp.int32)

    # Reference: plain JAX gather (same semantics as torch `w[x]`).
    ref = jnp.take(w, x.reshape(-1), axis=0).reshape(batch, seq, emd_layers)

    # Path A: resident-table one-hot gather (default for small tables).
    out_resident = jax.block_until_ready(cpu_embedding_forward(w, x))
    assert out_resident.shape == (batch, seq, emd_layers)
    assert jnp.allclose(out_resident, ref), "resident-table gather mismatch"

    # Path B: large-table fallback (manual windowed DMA row gather), exercised
    # here with a tiny index block to validate it on hardware as well.
    out_dma = jax.block_until_ready(
        cpu_embedding_forward(w, x, block_indices=8, force_dma_gather=True))
    assert jnp.allclose(out_dma, ref), "DMA row-gather mismatch"

    print("KERNEL_OK")
</pallas_src>

<mosaic_0001>
module attributes {stable_mosaic.version = 11 : i64} {
  func.func @_resident_gather_kernel(%arg0: i32, %arg1: memref<16x1xi32, #tpu.memory_space<vmem>>, %arg2: memref<64x128xf32, #tpu.memory_space<vmem>>, %arg3: memref<16x128xf32, #tpu.memory_space<vmem>>) attributes {dimension_semantics = [#tpu.dimension_semantics<parallel>], iteration_bounds = array<i64: 1>, scalar_prefetch = 0 : i64, scratch_operands = 0 : i64, tpu.core_type = #tpu.core_type<tc>, window_params = [{transform_indices = @transform_0, window_bounds = array<i64: 16, 1>}, {pipeline_mode = #tpu.pipeline_mode<synchronous>, transform_indices = @transform_1, window_bounds = array<i64: 64, 128>}, {transform_indices = @transform_2, window_bounds = array<i64: 16, 128>}]} {
    %c0 = arith.constant 0 : index
    %c0_0 = arith.constant 0 : index
    %0 = vector.load %arg1[%c0, %c0_0] : memref<16x1xi32, #tpu.memory_space<vmem>>, vector<16x1xi32>
    %1 = tpu.iota {dimensions = array<i32: 1>} : vector<16x64xi32>
    %2 = vector.broadcast %0 : vector<16x1xi32> to vector<16x64xi32>
    %3 = arith.cmpi eq, %2, %1 : vector<16x64xi32>
    %4 = arith.extui %3 : vector<16x64xi1> to vector<16x64xi32>
    %5 = arith.sitofp %4 : vector<16x64xi32> to vector<16x64xf32>
    %c0_1 = arith.constant 0 : index
    %c0_2 = arith.constant 0 : index
    %6 = vector.load %arg2[%c0_1, %c0_2] : memref<64x128xf32, #tpu.memory_space<vmem>>, vector<64x128xf32>
    %cst = arith.constant dense<0.000000e+00> : vector<16x128xf32>
    %7 = tpu.matmul %5, %6, %cst {dimension_numbers = #tpu.dot_dimension_numbers<[1], [0], [0], [1], [0, 0, 1, 1], [], []>} : vector<16x64xf32>, vector<64x128xf32>, vector<16x128xf32> -> vector<16x128xf32>
    %c0_3 = arith.constant 0 : index
    %c0_4 = arith.constant 0 : index
    %8 = vector.load %arg3[%c0_3, %c0_4] : memref<16x128xf32, #tpu.memory_space<vmem>>, vector<16x128xf32>
    tpu.vector_store %arg3[%c0_3, %c0_4], %7 {strides = array<i32>} : memref<16x128xf32, #tpu.memory_space<vmem>>, vector<16x128xf32>,
    return
  }
  func.func @transform_0(%arg0: i32) -> (i32, i32) {
    %c0_i32 = arith.constant 0 : i32
    %c0_i32_0 = arith.constant 0 : i32
    return %arg0, %c0_i32 : i32, i32
  }
  func.func @transform_1(%arg0: i32) -> (i32, i32) {
    %c0_i32 = arith.constant 0 : i32
    %c0_i32_0 = arith.constant 0 : i32
    %c0_i32_1 = arith.constant 0 : i32
    return %c0_i32, %c0_i32_0 : i32, i32
  }
  func.func @transform_2(%arg0: i32) -> (i32, i32) {
    %c0_i32 = arith.constant 0 : i32
    %c0_i32_0 = arith.constant 0 : i32
    return %arg0, %c0_i32 : i32, i32
  }
}

</mosaic_0001>

<llo_original>
// kernel: tpu_custom_call.1
$region0: #{tpu_custom_call.1}
  #allocation0 [shape = 'u32[]', space=smem, size = 0x4, offset = 0x4, fixed_abs, tag = 'smem constant byte address 0x4 - core index']
  #allocation1 [shape = 'u32[144,128]{1,0:T(1,128)}', space=vmem, size = 0x12000, scoped, tag = 'internal scratch']
  %s0 = inlined_call_operand.vmem [shape: s32[16,1], index: 0, kind: input, shape index: {}]
  %s1 = inlined_call_operand.hbm [shape: f32[64,128], index: 1, kind: input, shape index: {}]
  %s2 = inlined_call_operand.hbm [shape: f32[16,128], index: 2, kind: output, shape index: {}]
  %s3 = sld [smem:[#allocation0]]
  $region22: #{tpu_custom_call.1} parent=0
    _
  %s5 = ssub.s32 1, %s3
  %s6 = scalar_select 0, %s5, %s3
  $region1: #{tpu_custom_call.1} parent=0
    #allocation2 [shape = 'u8[32768]{0}', space=vmem, size = 0x8000, scoped, tag = 'input window, operand 1, single buffered']
    #allocation3 [shape = 's32[1]{0}', space=sflag, size = 0x4, scoped, tag = 'scoped memory for tpu_custom_call.1']
    #allocation4 [shape = 's32[1]{0}', space=sflag, size = 0x4, scoped, tag = 'scoped memory for tpu_custom_call.1']
    #allocation5 [shape = 'u8[8192]{0}', space=vmem, size = 0x2000, scoped, tag = 'output window, operand 0, single buffered']
    %7 = vsyncpa [#allocation3], 0
    %8 = vsyncpa [#allocation4], 0
    // Predicated region
    $region2: #{tpu_custom_call.1} parent=1 // pred_check
      _
    $region3: #{tpu_custom_call.1} parent=1 // pred_check_branch
      %10 = sbr.rel (0) target = $region5
    $region4: #{tpu_custom_call.1} parent=1 // pred_region
      _
    $region5: #{tpu_custom_call.1} parent=1 // pred_fallthru
      _
    // Predicated region
    $region6: #{tpu_custom_call.1} parent=1 // pred_check
      _
    $region7: #{tpu_custom_call.1} parent=1 // pred_check_branch
      %12 = sbr.rel (0) target = $region9
    $region8: #{tpu_custom_call.1} parent=1 // pred_region
      %s14 = ssub.s32 1024, 1024
      %15 = vsyncadd [#allocation3], %s14
      %s16 = sshll.u32 [#allocation2], 4
      %s17 = int_to_ptr.vmem [resolvable:$true] %s16
      %22 = dma.hbm_to_vmem [thread:$0]  %s1, 1024, %s17, [#allocation3], 128, 128, 8
    $region9: #{tpu_custom_call.1} parent=1 // pred_fallthru
      _
    // Predicated region
    $region10: #{tpu_custom_call.1} parent=1 // pred_check
      _
    $region11: #{tpu_custom_call.1} parent=1 // pred_check_branch
      %24 = sbr.rel (0) target = $region13
    $region12: #{tpu_custom_call.1} parent=1 // pred_region
      %25 = dma.done [#allocation3], 1024
    $region13: #{tpu_custom_call.1} parent=1 // pred_fallthru
      _
    %v26 = vld [vmem:[%s0] sm:$0xff]
    %v27 = vld [vmem:[%s0 + $0x8] sm:$0xff]
    %v28 = vlaneseq
    %v29 = vand.u32 %v28, 127
    %30 = vset.pattern.permute.xlu0 0
    %31 = vperm.xlu0 %30, %v26
    %v32 = vpop.permute.xlu0 %31
    %33 = vset.pattern.permute.xlu0 0
    %34 = vperm.xlu0 %33, %v27
    %v35 = vpop.permute.xlu0 %34
    %vm36 = vcmp.eq.s32.totalorder %v32, %v29
    %vm37 = vcmp.eq.s32.totalorder %v35, %v29
    %v38 = vsel %vm36, 1, 0
    %v39 = vsel %vm37, 1, 0
    %v40 = vcvt.s32.f32 %v38
    %v41 = vcvt.s32.f32 %v39
    %v42 = vld [vmem:[#allocation2] sm:$0xff]
    %v43 = vld [vmem:[#allocation2 + $0x8] sm:$0xff]
    %v44 = vld [vmem:[#allocation2 + $0x10] sm:$0xff]
    %v45 = vld [vmem:[#allocation2 + $0x18] sm:$0xff]
    %v46 = vld [vmem:[#allocation2 + $0x20] sm:$0xff]
    %v47 = vld [vmem:[#allocation2 + $0x28] sm:$0xff]
    %v48 = vld [vmem:[#allocation2 + $0x30] sm:$0xff]
    %v49 = vld [vmem:[#allocation2 + $0x38] sm:$0xff]
    %vm50 = vcmask 523264
    %v52 = vsel %vm50, %v40, 0
    %v55 = vsel %vm50, %v41, 0
    %57 = vmatprep.subr.mxu0 0.0
    %58 = vmatpush1.msra.mxu0 0.0
    %59 = vmatprep.subr.mxu0 0.0
    %60 = vmatpush1.msra.mxu0 0.0
    %61 = vmatprep.subr.mxu0 0.0
    %62 = vmatpush1.msra.mxu0 0.0
    %63 = vmatprep.subr.mxu0 0.0
    %64 = vmatpush1.msra.mxu0 0.0
    %65 = vmatprep.subr.mxu0 0.0
    %66 = vmatpush1.msra.mxu0 0.0
    %67 = vmatprep.subr.mxu0 0.0
    %68 = vmatpush1.msra.mxu0 0.0
    %69 = vmatprep.subr.mxu0 0.0
    %70 = vmatpush1.msra.mxu0 0.0
    %71 = vmatprep.subr.mxu0 0.0
    %72 = vmatpush1.msra.mxu0 0.0
    %73 = vmatprep.subr.mxu0 0.0
    %74 = vmatpush1.msra.mxu0 %v49
    %75 = vmatprep.subr.mxu0 0.0
    %76 = vmatpush1.msra.mxu0 %v48
    %77 = vmatprep.subr.mxu0 0.0
    %78 = vmatpush1.msra.mxu0 %v47
    %79 = vmatprep.subr.mxu0 0.0
    %80 = vmatpush1.msra.mxu0 %v46
    %81 = vmatprep.subr.mxu0 0.0
    %82 = vmatpush1.msra.mxu0 %v45
    %83 = vmatprep.subr.mxu0 0.0
    %84 = vmatpush1.msra.mxu0 %v44
    %85 = vmatprep.subr.mxu0 0.0
    %86 = vmatpush1.msra.mxu0 %v43
    %87 = vmatprep.subr.mxu0 0.0
    %88 = vmatpush1.msra.mxu0 %v42
    %89 = vmatprep.subr.mxu0 0.0
    %90 = vmatpush2.msra.mxu0 0.0
    %91 = vmatprep.subr.mxu0 0.0
    %92 = vmatpush2.msra.mxu0 0.0
    %93 = vmatprep.subr.mxu0 0.0
    %94 = vmatpush2.msra.mxu0 0.0
    %95 = vmatprep.subr.mxu0 0.0
    %96 = vmatpush2.msra.mxu0 0.0
    %97 = vmatprep.subr.mxu0 0.0
    %98 = vmatpush2.msra.mxu0 0.0
    %99 = vmatprep.subr.mxu0 0.0
    %100 = vmatpush2.msra.mxu0 0.0
    %101 = vmatprep.subr.mxu0 0.0
    %102 = vmatpush2.msra.mxu0 0.0
    %103 = vmatprep.subr.mxu0 0.0
    %104 = vmatpush2.msra.mxu0 0.0
    %105 = vmatprep.subr.mxu0 0.0
    %106 = vmatpush2.msra.mxu0 0.0
    %107 = vmatprep.subr.mxu0 0.0
    %108 = vmatpush2.msra.mxu0 0.0
    %109 = vmatprep.subr.mxu0 0.0
    %110 = vmatpush2.msra.mxu0 0.0
    %111 = vmatprep.subr.mxu0 0.0
    %112 = vmatpush2.msra.mxu0 0.0
    %113 = vmatprep.subr.mxu0 0.0
    %114 = vmatpush2.msra.mxu0 0.0
    %115 = vmatprep.subr.mxu0 0.0
    %116 = vmatpush2.msra.mxu0 0.0
    %117 = vmatprep.subr.mxu0 0.0
    %118 = vmatpush2.msra.mxu0 0.0
    %119 = vmatprep.subr.mxu0 0.0
    %120 = vmatpush2.msra.mxu0 0.0
    %121 = vmatprep.mubr.f32.mxu0 0.0
    %122 = vmatmul.mubr.f32.gmra.mxu0 %v52
    %v123 = vpop.f32.mrf.mxu0
    %v124 = vadd.f32 0.0, %v123
    %v125 = vpop.f32.mrf.mxu0
    %126 = vmatprep.mubr.f32.mxu0 0.0
    %127 = vmatmul.mubr.f32.gmra.mxu0 %v55
    %v128 = vpop.f32.mrf.mxu0
    %v129 = vadd.f32 0.0, %v128
    %v130 = vpop.f32.mrf.mxu0
    %131 = vdwg.mxu0
    %132 = vst [vmem:[#allocation5] sm:$0xff] %v124
    %133 = vst [vmem:[#allocation5 + $0x8] sm:$0xff] %v129
    // Predicated region
    $region14: #{tpu_custom_call.1} parent=1 // pred_check
      _
    $region15: #{tpu_custom_call.1} parent=1 // pred_check_branch
      %135 = sbr.rel (0) target = $region17
    $region16: #{tpu_custom_call.1} parent=1 // pred_region
      %s137 = ssub.s32 256, 256
      %138 = vsyncadd [#allocation4], %s137
      %s139 = sshll.u32 [#allocation5], 4
      %s140 = int_to_ptr.vmem [resolvable:$true] %s139
      %145 = dma.vmem_to_hbm [thread:$0]  %s140, 256, %s2, [#allocation4], 128, 128, 8
    $region17: #{tpu_custom_call.1} parent=1 // pred_fallthru
      _
    // Predicated region
    $region18: #{tpu_custom_call.1} parent=1 // pred_check
      _
    $region19: #{tpu_custom_call.1} parent=1 // pred_check_branch
      %147 = sbr.rel (0) target = $region21
    $region20: #{tpu_custom_call.1} parent=1 // pred_region
      %148 = dma.done [#allocation4], 256
    $region21: #{tpu_custom_call.1} parent=1 // pred_fallthru
      _
    %149 = vsyncpa [#allocation3], 1
    %150 = vsyncpa [#allocation4], 1

</llo_original>
